<compile_context>
chip_gen: v7x
topology: tpu7x:2x2x1
jax: 0.10.0
libtpu: 0.0.40
codegen_flags: <defaults>
</compile_context>

<pallas_src>
import jax
import jax.numpy as jnp
from jax import lax
from jax.experimental import pallas as pl
from jax.experimental.pallas import tpu as pltpu


def _round_up(x, m):
    return ((x + m - 1) // m) * m


def critic_kernel(x_ref, w1_ref, b1_ref, w2_ref, b2_ref, w3_ref, b3_ref, o_ref):
    # x_ref:  (TM, D)       f32   (streamed per grid step, true feature width)
    # w1_ref: (D, Hp)       bf16  (resident)
    # b1_ref: (1, Hp)       f32
    # w2_ref: (Hp, Hp)      bf16  (resident)
    # b2_ref: (1, Hp)       f32
    # w3_ref: (8, Hp)       f32   (row 0 = real final-layer weights, rows 1..7 zero)
    # b3_ref: (1,)          f32   SMEM scalar
    # o_ref:  (1, 1, TM)    f32   lane-dense output block
    x = x_ref[...].astype(jnp.bfloat16)                                   # VPU cast
    h1 = jnp.dot(x, w1_ref[...], preferred_element_type=jnp.float32) + b1_ref[...]
    h1 = jnp.maximum(h1, 0.0)
    h2 = jnp.dot(h1.astype(jnp.bfloat16), w2_ref[...],
                 preferred_element_type=jnp.float32) + b2_ref[...]
    h2 = jnp.maximum(h2, 0.0)                                             # (TM, Hp) f32
    # Final layer (out_features == 1): contract Hp of (8, Hp) against Hp of (TM, Hp)
    # (i.e. rhs-transposed matmul) so the result (8, TM) is already lane-dense; only
    # row 0 is meaningful (rows 1..7 of w3 are zero).
    vals = lax.dot_general(
        w3_ref[...], h2,
        dimension_numbers=(((1,), (1,)), ((), ())),
        preferred_element_type=jnp.float32)                               # (8, TM)
    o_ref[0] = (vals[0:1, :] + b3_ref[0]).astype(o_ref.dtype)             # (1, TM)


def init_params(key, input_dim, hidden_dim):
    """Deterministic PyTorch-style uniform(-1/sqrt(fan_in), 1/sqrt(fan_in)) init."""
    keys = jax.random.split(key, 6)

    def linear(kw, kb, fan_in, fan_out):
        bound = 1.0 / jnp.sqrt(float(fan_in))
        w = jax.random.uniform(kw, (fan_in, fan_out), jnp.float32, -bound, bound)
        b = jax.random.uniform(kb, (fan_out,), jnp.float32, -bound, bound)
        return w, b

    w1, b1 = linear(keys[0], keys[1], input_dim, hidden_dim)
    w2, b2 = linear(keys[2], keys[3], hidden_dim, hidden_dim)
    w3, b3 = linear(keys[4], keys[5], hidden_dim, 1)
    return {"w1": w1, "b1": b1, "w2": w2, "b2": b2, "w3": w3, "b3": b3}


def prepare_params(params):
    """One-time layout prep.

    * Hidden dim padded to a multiple of 128 (lane-aligned); padding is exact: zero
      weights/biases keep padded units at 0 through ReLU and they are killed by the
      zero w3 columns.
    * Input dim is NOT padded: x is streamed at true width and the first matmul runs
      with K = input_dim.
    * Matmul weights bf16 (f32 accumulation); biases and the final row stay f32.
    * w3 is stored as an (8, Hp) block (row 0 real, rows 1..7 zero) so the final layer
      is a standard small MXU matmul producing a lane-dense (8, TM) tile.
    """
    w1, b1 = params["w1"], params["b1"]
    w2, b2 = params["w2"], params["b2"]
    w3, b3 = params["w3"], params["b3"]
    D, H = w1.shape
    Hp = _round_up(H, 128)

    def padc(a, cols):
        return jnp.pad(a, ((0, 0), (0, cols - a.shape[1])))

    return {
        "w1": padc(w1, Hp).astype(jnp.bfloat16),                               # (D, Hp)
        "b1": padc(b1.reshape(1, -1), Hp).astype(jnp.float32),                 # (1, Hp)
        "w2": jnp.pad(w2, ((0, Hp - H), (0, Hp - H))).astype(jnp.bfloat16),    # (Hp, Hp)
        "b2": padc(b2.reshape(1, -1), Hp).astype(jnp.float32),                 # (1, Hp)
        "w3": jnp.pad(w3.reshape(1, -1), ((0, 7), (0, Hp - H))).astype(jnp.float32),  # (8, Hp)
        "b3": b3.reshape(1).astype(jnp.float32),                               # (1,)
    }


def critic_forward(state, prep, tile_m=4096):
    """state: [B, input_dim] f32  ->  [B, 1] f32."""
    B, D = state.shape
    Hp = prep["w2"].shape[0]

    # Batch tile: multiple of 8 sublanes; large by default (amortizes per-grid-step
    # overhead), but capped so there are >= 2 grid steps when B allows it so both v7x
    # TensorCores get work ("parallel" batch axis). Sweep tile_m in 2048..8192.
    TM = max(8, min(tile_m, _round_up(max(B // 2, 1), 8)))
    B_pad = _round_up(B, TM)
    num_tiles = B_pad // TM

    # Only the batch dim is (lightly) padded; no feature pad / dtype cast round trip.
    x = state if B_pad == B else jnp.pad(state, ((0, B_pad - B), (0, 0)))

    flops = 2 * B_pad * (D * Hp + Hp * Hp + 8 * Hp)
    bytes_accessed = (
        B_pad * D * 4                    # x stream (f32, true width)
        + (D * Hp + Hp * Hp) * 2         # bf16 weights (resident)
        + (2 * Hp + 8 * Hp + 1) * 4      # f32 biases + final-layer rows + b3
        + B_pad * 4                      # output
    )

    # NOTE: w1/w2 stay fully VMEM-resident (constant index_maps). For hidden_dim
    # >~ 2048 on v7x (64 MiB VMEM) either raise vmem_limit_bytes or tile the hidden
    # dim with an extra "arbitrary" grid axis instead.
    out = pl.pallas_call(
        critic_kernel,
        out_shape=jax.ShapeDtypeStruct((num_tiles, 1, TM), jnp.float32),
        grid=(num_tiles,),
        in_specs=[
            pl.BlockSpec((TM, D), lambda i: (i, 0)),             # x tile (streamed)
            pl.BlockSpec((D, Hp), lambda i: (0, 0)),             # w1 (resident)
            pl.BlockSpec((1, Hp), lambda i: (0, 0)),             # b1
            pl.BlockSpec((Hp, Hp), lambda i: (0, 0)),            # w2 (resident)
            pl.BlockSpec((1, Hp), lambda i: (0, 0)),             # b2
            pl.BlockSpec((8, Hp), lambda i: (0, 0)),             # w3 rows (row 0 real)
            pl.BlockSpec(memory_space=pltpu.MemorySpace.SMEM),   # b3 scalar
        ],
        out_specs=pl.BlockSpec((1, 1, TM), lambda i: (i, 0, 0)), # lane-dense output
        compiler_params=pltpu.CompilerParams(
            dimension_semantics=("parallel",)),
        cost_estimate=pl.CostEstimate(
            flops=flops, transcendentals=0, bytes_accessed=bytes_accessed),
    )(x, prep["w1"], prep["b1"], prep["w2"], prep["b2"], prep["w3"], prep["b3"])

    return out.reshape(B_pad, 1)[:B]


def critic_ref(state, params):
    """Pure-JAX f32 reference for correctness check."""
    h = jnp.maximum(state @ params["w1"] + params["b1"], 0.0)
    h = jnp.maximum(h @ params["w2"] + params["b2"], 0.0)
    return h @ params["w3"] + params["b3"]


if __name__ == "__main__":
    key = jax.random.PRNGKey(0)
    k_params, k_state, k_state2 = jax.random.split(key, 3)

    batch = 8
    input_dim = 16
    hidden_dim = 32

    params = init_params(k_params, input_dim, hidden_dim)
    prep = prepare_params(params)

    # Small batch (single grid step).
    state = jax.random.normal(k_state, (batch, input_dim), jnp.float32)
    out = jax.block_until_ready(critic_forward(state, prep))
    ref = critic_ref(state, params)
    assert out.shape == (batch, 1), out.shape
    # bf16 MXU inputs -> relaxed tolerance vs. the f32 reference.
    assert jnp.allclose(out, ref, atol=3e-2, rtol=3e-2), (out, ref)

    # Larger, non-multiple batch with a small tile to exercise the multi-step
    # pipelined grid + batch-padding path.
    batch2 = 40
    state2 = jax.random.normal(k_state2, (batch2, input_dim), jnp.float32)
    out2 = jax.block_until_ready(critic_forward(state2, prep, tile_m=16))
    ref2 = critic_ref(state2, params)
    assert out2.shape == (batch2, 1), out2.shape
    assert jnp.allclose(out2, ref2, atol=3e-2, rtol=3e-2), (out2, ref2)

    print("KERNEL_OK")
</pallas_src>

<mosaic_0001>
module attributes {stable_mosaic.version = 11 : i64} {
  func.func @critic_kernel(%arg0: i32, %arg1: memref<8x16xf32, #tpu.memory_space<vmem>>, %arg2: memref<16x128xbf16, #tpu.memory_space<vmem>>, %arg3: memref<1x128xf32, #tpu.memory_space<vmem>>, %arg4: memref<128x128xbf16, #tpu.memory_space<vmem>>, %arg5: memref<1x128xf32, #tpu.memory_space<vmem>>, %arg6: memref<8x128xf32, #tpu.memory_space<vmem>>, %arg7: memref<1xf32, #tpu.memory_space<smem>>, %arg8: memref<1x1x8xf32, #tpu.memory_space<vmem>>) attributes {dimension_semantics = [#tpu.dimension_semantics<parallel>], iteration_bounds = array<i64: 1>, scalar_prefetch = 0 : i64, scratch_operands = 0 : i64, tpu.core_type = #tpu.core_type<tc>, window_params = [{transform_indices = @transform_0, window_bounds = array<i64: 8, 16>}, {pipeline_mode = #tpu.pipeline_mode<synchronous>, transform_indices = @transform_1, window_bounds = array<i64: 16, 128>}, {pipeline_mode = #tpu.pipeline_mode<synchronous>, transform_indices = @transform_2, window_bounds = array<i64: 1, 128>}, {pipeline_mode = #tpu.pipeline_mode<synchronous>, transform_indices = @transform_3, window_bounds = array<i64: 128, 128>}, {pipeline_mode = #tpu.pipeline_mode<synchronous>, transform_indices = @transform_4, window_bounds = array<i64: 1, 128>}, {pipeline_mode = #tpu.pipeline_mode<synchronous>, transform_indices = @transform_5, window_bounds = array<i64: 8, 128>}, {transform_indices = @transform_6, window_bounds = array<i64: 1>}, {transform_indices = @transform_7, window_bounds = array<i64: 1, 1, 8>}]} {
    %c0 = arith.constant 0 : index
    %c0_0 = arith.constant 0 : index
    %0 = vector.load %arg1[%c0, %c0_0] : memref<8x16xf32, #tpu.memory_space<vmem>>, vector<8x16xf32>
    %1 = arith.truncf %0 : vector<8x16xf32> to vector<8x16xbf16>
    %c0_1 = arith.constant 0 : index
    %c0_2 = arith.constant 0 : index
    %2 = vector.load %arg2[%c0_1, %c0_2] : memref<16x128xbf16, #tpu.memory_space<vmem>>, vector<16x128xbf16>
    %cst = arith.constant dense<0.000000e+00> : vector<8x128xf32>
    %3 = tpu.matmul %1, %2, %cst {dimension_numbers = #tpu.dot_dimension_numbers<[1], [0], [0], [1], [0, 0, 1, 1], [], []>} : vector<8x16xbf16>, vector<16x128xbf16>, vector<8x128xf32> -> vector<8x128xf32>
    %c0_3 = arith.constant 0 : index
    %c0_4 = arith.constant 0 : index
    %4 = vector.load %arg3[%c0_3, %c0_4] : memref<1x128xf32, #tpu.memory_space<vmem>>, vector<1x128xf32>
    %5 = vector.broadcast %4 : vector<1x128xf32> to vector<8x128xf32>
    %6 = arith.addf %3, %5 : vector<8x128xf32>
    %cst_5 = arith.constant 0.000000e+00 : f32
    %7 = vector.broadcast %cst_5 : f32 to vector<8x128xf32>
    %8 = arith.maximumf %6, %7 : vector<8x128xf32>
    %9 = arith.truncf %8 : vector<8x128xf32> to vector<8x128xbf16>
    %c0_6 = arith.constant 0 : index
    %c0_7 = arith.constant 0 : index
    %10 = vector.load %arg4[%c0_6, %c0_7] : memref<128x128xbf16, #tpu.memory_space<vmem>>, vector<128x128xbf16>
    %cst_8 = arith.constant dense<0.000000e+00> : vector<8x128xf32>
    %11 = tpu.matmul %9, %10, %cst_8 {dimension_numbers = #tpu.dot_dimension_numbers<[1], [0], [0], [1], [0, 0, 1, 1], [], []>} : vector<8x128xbf16>, vector<128x128xbf16>, vector<8x128xf32> -> vector<8x128xf32>
    %c0_9 = arith.constant 0 : index
    %c0_10 = arith.constant 0 : index
    %12 = vector.load %arg5[%c0_9, %c0_10] : memref<1x128xf32, #tpu.memory_space<vmem>>, vector<1x128xf32>
    %13 = vector.broadcast %12 : vector<1x128xf32> to vector<8x128xf32>
    %14 = arith.addf %11, %13 : vector<8x128xf32>
    %cst_11 = arith.constant 0.000000e+00 : f32
    %15 = vector.broadcast %cst_11 : f32 to vector<8x128xf32>
    %16 = arith.maximumf %14, %15 : vector<8x128xf32>
    %c0_12 = arith.constant 0 : index
    %c0_13 = arith.constant 0 : index
    %17 = vector.load %arg6[%c0_12, %c0_13] : memref<8x128xf32, #tpu.memory_space<vmem>>, vector<8x128xf32>
    %cst_14 = arith.constant dense<0.000000e+00> : vector<8x8xf32>
    %18 = tpu.matmul %17, %16, %cst_14 {dimension_numbers = #tpu.dot_dimension_numbers<[1], [1], [0], [0], [0, 0, 1, 0], [], []>} : vector<8x128xf32>, vector<8x128xf32>, vector<8x8xf32> -> vector<8x8xf32>
    %19 = vector.extract_strided_slice %18 {offsets = [0, 0], sizes = [1, 8], strides = [1, 1]} : vector<8x8xf32> to vector<1x8xf32>
    %c0_15 = arith.constant 0 : index
    %20 = memref.load %arg7[%c0_15] : memref<1xf32, #tpu.memory_space<smem>>
    %21 = vector.broadcast %20 : f32 to vector<1x8xf32>
    %22 = arith.addf %19, %21 : vector<1x8xf32>
    %c0_16 = arith.constant 0 : index
    %c0_17 = arith.constant 0 : index
    %c0_18 = arith.constant 0 : index
    %23 = vector.load %arg8[%c0_16, %c0_17, %c0_18] : memref<1x1x8xf32, #tpu.memory_space<vmem>>, vector<1x1x8xf32>
    %24 = vector.shape_cast %23 : vector<1x1x8xf32> to vector<1x8xf32>
    %25 = vector.shape_cast %22 : vector<1x8xf32> to vector<1x1x8xf32>
    tpu.vector_store %arg8[%c0_16, %c0_17, %c0_18], %25 {strides = array<i32>} : memref<1x1x8xf32, #tpu.memory_space<vmem>>, vector<1x1x8xf32>,
    return
  }
  func.func @transform_0(%arg0: i32) -> (i32, i32) {
    %c0_i32 = arith.constant 0 : i32
    %c0_i32_0 = arith.constant 0 : i32
    return %arg0, %c0_i32 : i32, i32
  }
  func.func @transform_1(%arg0: i32) -> (i32, i32) {
    %c0_i32 = arith.constant 0 : i32
    %c0_i32_0 = arith.constant 0 : i32
    %c0_i32_1 = arith.constant 0 : i32
    return %c0_i32, %c0_i32_0 : i32, i32
  }
  func.func @transform_2(%arg0: i32) -> (i32, i32) {
    %c0_i32 = arith.constant 0 : i32
    %c0_i32_0 = arith.constant 0 : i32
    %c0_i32_1 = arith.constant 0 : i32
    return %c0_i32, %c0_i32_0 : i32, i32
  }
  func.func @transform_3(%arg0: i32) -> (i32, i32) {
    %c0_i32 = arith.constant 0 : i32
    %c0_i32_0 = arith.constant 0 : i32
    %c0_i32_1 = arith.constant 0 : i32
    return %c0_i32, %c0_i32_0 : i32, i32
  }
  func.func @transform_4(%arg0: i32) -> (i32, i32) {
    %c0_i32 = arith.constant 0 : i32
    %c0_i32_0 = arith.constant 0 : i32
    %c0_i32_1 = arith.constant 0 : i32
    return %c0_i32, %c0_i32_0 : i32, i32
  }
  func.func @transform_5(%arg0: i32) -> (i32, i32) {
    %c0_i32 = arith.constant 0 : i32
    %c0_i32_0 = arith.constant 0 : i32
    %c0_i32_1 = arith.constant 0 : i32
    return %c0_i32, %c0_i32_0 : i32, i32
  }
  func.func @transform_6(%arg0: i32) -> i32 {
    %c0_i32 = arith.constant 0 : i32
    %c0_i32_0 = arith.constant 0 : i32
    return %c0_i32 : i32
  }
  func.func @transform_7(%arg0: i32) -> (i32, i32, i32) {
    %c0_i32 = arith.constant 0 : i32
    %c0_i32_0 = arith.constant 0 : i32
    %c0_i32_1 = arith.constant 0 : i32
    return %arg0, %c0_i32, %c0_i32_0 : i32, i32, i32
  }
}

</mosaic_0001>

<llo_original>
// kernel: tpu_custom_call.1
$region0: #{tpu_custom_call.1}
  #allocation0 [shape = 'u32[]', space=smem, size = 0x4, offset = 0x4, fixed_abs, tag = 'smem constant byte address 0x4 - core index']
  #allocation1 [shape = 'u32[144,128]{1,0:T(1,128)}', space=vmem, size = 0x12000, scoped, tag = 'internal scratch']
  #allocation2 [shape = 'f32[1]{0:T(128)S(6)}', space=smem, size = 0x200, scoped, tag = 'scoped memory for tpu_custom_call.1']
  %s0 = inlined_call_operand.hbm [shape: f32[8,16], index: 0, kind: input, shape index: {}]
  %s1 = inlined_call_operand.hbm [shape: bf16[16,128], index: 1, kind: input, shape index: {}]
  %s2 = inlined_call_operand.vmem [shape: f32[1,128], index: 2, kind: input, shape index: {}]
  %s3 = inlined_call_operand.hbm [shape: bf16[128,128], index: 3, kind: input, shape index: {}]
  %s4 = inlined_call_operand.vmem [shape: f32[1,128], index: 4, kind: input, shape index: {}]
  %s5 = inlined_call_operand.vmem [shape: f32[8,128], index: 5, kind: input, shape index: {}]
  %s6 = inlined_call_operand.<no memory space> [shape: f32[1], index: 6, kind: input, shape index: {}]
  %s7 = inlined_call_operand.hbm [shape: f32[1,1,8], index: 7, kind: output, shape index: {}]
  %s8 = sld [smem:[#allocation0]]
  $region50: #{tpu_custom_call.1} parent=0
    _
  %s10 = ssub.s32 1, %s8
  %s11 = scalar_select 0, %s10, %s8
  %12 = sst [smem:[#allocation2]] %s6
  $region1: #{tpu_custom_call.1} parent=0
    #allocation3 [shape = 'u8[4096]{0}', space=vmem, size = 0x1000, scoped, tag = 'input window, operand 0, single buffered']
    #allocation4 [shape = 's32[1]{0}', space=sflag, size = 0x4, scoped, tag = 'scoped memory for tpu_custom_call.1']
    #allocation5 [shape = 's32[1]{0}', space=sflag, size = 0x4, scoped, tag = 'scoped memory for tpu_custom_call.1']
    #allocation6 [shape = 'u8[4096]{0}', space=vmem, size = 0x1000, scoped, tag = 'input window, operand 1, single buffered']
    #allocation7 [shape = 's32[1]{0}', space=sflag, size = 0x4, scoped, tag = 'scoped memory for tpu_custom_call.1']
    #allocation8 [shape = 'u8[32768]{0}', space=vmem, size = 0x8000, scoped, tag = 'input window, operand 3, single buffered']
    #allocation9 [shape = 'u8[512]{0}', space=vmem, size = 0x400, scoped, tag = 'output window, operand 0, single buffered']
    %13 = vsyncpa [#allocation4], 0
    %14 = vsyncpa [#allocation7], 0
    %15 = vsyncpa [#allocation5], 0
    // Predicated region
    $region2: #{tpu_custom_call.1} parent=1 // pred_check
      _
    $region3: #{tpu_custom_call.1} parent=1 // pred_check_branch
      %17 = sbr.rel (0) target = $region5
    $region4: #{tpu_custom_call.1} parent=1 // pred_region
      %s19 = ssub.s32 128, 128
      %20 = vsyncadd [#allocation4], %s19
      %s22 = sshll.u32 [#allocation3], 4
      %s23 = int_to_ptr.vmem [resolvable:$true] %s22
      %25 = dma.hbm_to_vmem [thread:$0]  %s0, 128, %s23, [#allocation4]
    $region5: #{tpu_custom_call.1} parent=1 // pred_fallthru
      _
    // Predicated region
    $region6: #{tpu_custom_call.1} parent=1 // pred_check
      _
    $region7: #{tpu_custom_call.1} parent=1 // pred_check_branch
      %27 = sbr.rel (0) target = $region9
    $region8: #{tpu_custom_call.1} parent=1 // pred_region
      %s29 = ssub.s32 128, 128
      %30 = vsyncadd [#allocation7], %s29
      %s31 = sshll.u32 [#allocation6], 4
      %s32 = int_to_ptr.vmem [resolvable:$true] %s31
      %37 = dma.hbm_to_vmem [thread:$0]  %s1, 128, %s32, [#allocation7], 64, 64, 4
    $region9: #{tpu_custom_call.1} parent=1 // pred_fallthru
      _
    // Predicated region
    $region10: #{tpu_custom_call.1} parent=1 // pred_check
      _
    $region11: #{tpu_custom_call.1} parent=1 // pred_check_branch
      %39 = sbr.rel (0) target = $region13
    $region12: #{tpu_custom_call.1} parent=1 // pred_region
      _
    $region13: #{tpu_custom_call.1} parent=1 // pred_fallthru
      _
    // Predicated region
    $region14: #{tpu_custom_call.1} parent=1 // pred_check
      _
    $region15: #{tpu_custom_call.1} parent=1 // pred_check_branch
      %41 = sbr.rel (0) target = $region17
    $region16: #{tpu_custom_call.1} parent=1 // pred_region
      %s43 = ssub.s32 1024, 1024
      %44 = vsyncadd [#allocation7], %s43
      %s45 = sshll.u32 [#allocation8], 4
      %s46 = int_to_ptr.vmem [resolvable:$true] %s45
      %51 = dma.hbm_to_vmem [thread:$0]  %s3, 1024, %s46, [#allocation7], 64, 64, 4
    $region17: #{tpu_custom_call.1} parent=1 // pred_fallthru
      _
    // Predicated region
    $region18: #{tpu_custom_call.1} parent=1 // pred_check
      _
    $region19: #{tpu_custom_call.1} parent=1 // pred_check_branch
      %53 = sbr.rel (0) target = $region21
    $region20: #{tpu_custom_call.1} parent=1 // pred_region
      _
    $region21: #{tpu_custom_call.1} parent=1 // pred_fallthru
      _
    // Predicated region
    $region22: #{tpu_custom_call.1} parent=1 // pred_check
      _
    $region23: #{tpu_custom_call.1} parent=1 // pred_check_branch
      %55 = sbr.rel (0) target = $region25
    $region24: #{tpu_custom_call.1} parent=1 // pred_region
      _
    $region25: #{tpu_custom_call.1} parent=1 // pred_fallthru
      _
    // Predicated region
    $region26: #{tpu_custom_call.1} parent=1 // pred_check
      _
    $region27: #{tpu_custom_call.1} parent=1 // pred_check_branch
      %57 = sbr.rel (0) target = $region29
    $region28: #{tpu_custom_call.1} parent=1 // pred_region
      _
    $region29: #{tpu_custom_call.1} parent=1 // pred_fallthru
      _
    // Predicated region
    $region30: #{tpu_custom_call.1} parent=1 // pred_check
      _
    $region31: #{tpu_custom_call.1} parent=1 // pred_check_branch
      %59 = sbr.rel (0) target = $region33
    $region32: #{tpu_custom_call.1} parent=1 // pred_region
      %60 = dma.done [#allocation4], 128
    $region33: #{tpu_custom_call.1} parent=1 // pred_fallthru
      _
    // Predicated region
    $region34: #{tpu_custom_call.1} parent=1 // pred_check
      _
    $region35: #{tpu_custom_call.1} parent=1 // pred_check_branch
      %62 = sbr.rel (0) target = $region37
    $region36: #{tpu_custom_call.1} parent=1 // pred_region
      %63 = dma.done [#allocation7], 128
    $region37: #{tpu_custom_call.1} parent=1 // pred_fallthru
      _
    // Predicated region
    $region38: #{tpu_custom_call.1} parent=1 // pred_check
      _
    $region39: #{tpu_custom_call.1} parent=1 // pred_check_branch
      %65 = sbr.rel (0) target = $region41
    $region40: #{tpu_custom_call.1} parent=1 // pred_region
      %66 = dma.done [#allocation7], 1024
    $region41: #{tpu_custom_call.1} parent=1 // pred_fallthru
      _
    %v68 = vld [vmem:[#allocation3] sm:$0xff]
    %v69 = vpack.c.bf16 %v68, %v68
    %v70 = vld [vmem:[#allocation6] sm:$0xf]
    %v71 = vld [vmem:[#allocation6 + $0x4] sm:$0xf]
    %v72 = vld [vmem:[%s2] sm:$0x1]
    %v74 = vlaneseq
    %v75 = vshrl.u32 %v74, 7
    %v76 = vsub.s32 0, %v75
    %v77 = vrot.slane %v72, %v76
    %v81 = vunpack.c.l.b16 %v70
    %v82 = vunpack.c.l.b16 %v71
    %v83 = vpack.c.b16 %v82, %v81
    %vm85 = vcmask 130048
    %v87 = vsel %vm85, %v69, 0
    %89 = vmatprep.subr.bf16.mxu0 0
    %90 = vmatpush1.bf16.msra.mxu0 %v83
    %91 = vmatprep.subr.bf16.mxu0 0
    %92 = vmatpush1.bf16.msra.mxu0 0
    %93 = vmatprep.subr.bf16.mxu0 0
    %94 = vmatpush1.bf16.msra.mxu0 0
    %95 = vmatprep.subr.bf16.mxu0 0
    %96 = vmatpush1.bf16.msra.mxu0 0
    %97 = vmatprep.subr.bf16.mxu0 0
    %98 = vmatpush1.bf16.msra.mxu0 0
    %99 = vmatprep.subr.bf16.mxu0 0
    %100 = vmatpush1.bf16.msra.mxu0 0
    %101 = vmatprep.subr.bf16.mxu0 0
    %102 = vmatpush1.bf16.msra.mxu0 0
    %103 = vmatprep.subr.bf16.mxu0 0
    %104 = vmatpush1.bf16.msra.mxu0 0
    %105 = vmatprep.subr.bf16.mxu0 0
    %106 = vmatpush1.bf16.msra.mxu0 0
    %107 = vmatprep.subr.bf16.mxu0 0
    %108 = vmatpush1.bf16.msra.mxu0 0
    %109 = vmatprep.subr.bf16.mxu0 0
    %110 = vmatpush1.bf16.msra.mxu0 0
    %111 = vmatprep.subr.bf16.mxu0 0
    %112 = vmatpush1.bf16.msra.mxu0 0
    %113 = vmatprep.subr.bf16.mxu0 0
    %114 = vmatpush1.bf16.msra.mxu0 0
    %115 = vmatprep.subr.bf16.mxu0 0
    %116 = vmatpush1.bf16.msra.mxu0 0
    %117 = vmatprep.subr.bf16.mxu0 0
    %118 = vmatpush1.bf16.msra.mxu0 0
    %119 = vmatprep.subr.bf16.mxu0 0
    %120 = vmatpush1.bf16.msra.mxu0 0
    %121 = vmatprep.mubr.bf16.mxu0 0
    %122 = vmatmul.mubr.bf16.gmra.mrb[0].mxu0 %v87
    %v123 = vpop.f32.mrb[0].mxu0
    %v124 = vadd.f32 %v77, %v123
    %v125 = vpop.f32.mrb[0].mxu0
    %v126 = vpop.f32.mrb[0].mxu0
    %v127 = vpop.f32.mrb[0].mxu0
    %128 = vdwg.mxu0
    %v129 = vmax.f32 %v124, 0.0
    %v130 = vpack.c.bf16 %v129, %v129
    %v131 = vld [vmem:[#allocation8] sm:$0xf]
    %v132 = vld [vmem:[#allocation8 + $0x4] sm:$0xf]
    %v133 = vld [vmem:[#allocation8 + $0x8] sm:$0xf]
    %v134 = vld [vmem:[#allocation8 + $0xc] sm:$0xf]
    %v135 = vld [vmem:[#allocation8 + $0x10] sm:$0xf]
    %v136 = vld [vmem:[#allocation8 + $0x14] sm:$0xf]
    %v137 = vld [vmem:[#allocation8 + $0x18] sm:$0xf]
    %v138 = vld [vmem:[#allocation8 + $0x1c] sm:$0xf]
    %v139 = vld [vmem:[#allocation8 + $0x20] sm:$0xf]
    %v140 = vld [vmem:[#allocation8 + $0x24] sm:$0xf]
    %v141 = vld [vmem:[#allocation8 + $0x28] sm:$0xf]
    %v142 = vld [vmem:[#allocation8 + $0x2c] sm:$0xf]
    %v143 = vld [vmem:[#allocation8 + $0x30] sm:$0xf]
    %v144 = vld [vmem:[#allocation8 + $0x34] sm:$0xf]
    %v145 = vld [vmem:[#allocation8 + $0x38] sm:$0xf]
    %v146 = vld [vmem:[#allocation8 + $0x3c] sm:$0xf]
    %v147 = vld [vmem:[%s4] sm:$0x1]
    %v149 = vlaneseq
    %v150 = vshrl.u32 %v149, 7
    %v151 = vsub.s32 0, %v150
    %v152 = vrot.slane %v147, %v151
    %v170 = vunpack.c.l.b16 %v131
    %v171 = vunpack.c.l.b16 %v132
    %v172 = vunpack.c.l.b16 %v133
    %v173 = vunpack.c.l.b16 %v134
    %v174 = vunpack.c.l.b16 %v135
    %v175 = vunpack.c.l.b16 %v136
    %v176 = vunpack.c.l.b16 %v137
    %v177 = vunpack.c.l.b16 %v138
    %v178 = vunpack.c.l.b16 %v139
    %v179 = vunpack.c.l.b16 %v140
    %v180 = vunpack.c.l.b16 %v141
    %v181 = vunpack.c.l.b16 %v142
    %v182 = vunpack.c.l.b16 %v143
    %v183 = vunpack.c.l.b16 %v144
    %v184 = vunpack.c.l.b16 %v145
    %v185 = vunpack.c.l.b16 %v146
    %v186 = vpack.c.b16 %v171, %v170
    %v187 = vpack.c.b16 %v173, %v172
    %v188 = vpack.c.b16 %v175, %v174
    %v189 = vpack.c.b16 %v177, %v176
    %v190 = vpack.c.b16 %v179, %v178
    %v191 = vpack.c.b16 %v181, %v180
    %v192 = vpack.c.b16 %v183, %v182
    %v193 = vpack.c.b16 %v185, %v184
    %202 = vmatprep.subr.bf16.mxu0 0
    %203 = vmatpush1.bf16.msra.mxu0 %v186
    %204 = vmatprep.subr.bf16.mxu0 0
    %205 = vmatpush1.bf16.msra.mxu0 %v187
    %206 = vmatprep.subr.bf16.mxu0 0
    %207 = vmatpush1.bf16.msra.mxu0 %v188
    %208 = vmatprep.subr.bf16.mxu0 0
    %209 = vmatpush1.bf16.msra.mxu0 %v189
    %210 = vmatprep.subr.bf16.mxu0 0
    %211 = vmatpush1.bf16.msra.mxu0 %v190
    %212 = vmatprep.subr.bf16.mxu0 0
    %213 = vmatpush1.bf16.msra.mxu0 %v191
    %214 = vmatprep.subr.bf16.mxu0 0
    %215 = vmatpush1.bf16.msra.mxu0 %v192
    %216 = vmatprep.subr.bf16.mxu0 0
    %217 = vmatpush1.bf16.msra.mxu0 %v193
    %218 = vmatprep.subr.bf16.mxu0 0
    %219 = vmatpush1.bf16.msra.mxu0 0
    %220 = vmatprep.subr.bf16.mxu0 0
    %221 = vmatpush1.bf16.msra.mxu0 0
    %222 = vmatprep.subr.bf16.mxu0 0
    %223 = vmatpush1.bf16.msra.mxu0 0
    %224 = vmatprep.subr.bf16.mxu0 0
    %225 = vmatpush1.bf16.msra.mxu0 0
    %226 = vmatprep.subr.bf16.mxu0 0
    %227 = vmatpush1.bf16.msra.mxu0 0
    %228 = vmatprep.subr.bf16.mxu0 0
    %229 = vmatpush1.bf16.msra.mxu0 0
    %230 = vmatprep.subr.bf16.mxu0 0
    %231 = vmatpush1.bf16.msra.mxu0 0
    %232 = vmatprep.subr.bf16.mxu0 0
    %233 = vmatpush1.bf16.msra.mxu0 0
    %234 = vmatprep.mubr.bf16.mxu0 0
    %235 = vmatmul.mubr.bf16.gmra.mrb[0].mxu0 %v130
    %v236 = vpop.f32.mrb[0].mxu0
    %v237 = vadd.f32 %v152, %v236
    %v238 = vpop.f32.mrb[0].mxu0
    %v239 = vpop.f32.mrb[0].mxu0
    %v240 = vpop.f32.mrb[0].mxu0
    %241 = vdwg.mxu0
    %v242 = vmax.f32 %v237, 0.0
    %v243 = vld [vmem:[%s5] sm:$0xff]
    %244 = vmatprep.subr.mxu0 0.0
    %245 = vmatpush1.xpose.msra.mxu0 %v242
    %246 = vmatprep.subr.mxu0 0.0
    %247 = vmatpush1.xpose.msra.mxu0 0.0
    %248 = vmatprep.subr.mxu0 0.0
    %249 = vmatpush1.xpose.msra.mxu0 0.0
    %250 = vmatprep.subr.mxu0 0.0
    %251 = vmatpush1.xpose.msra.mxu0 0.0
    %252 = vmatprep.subr.mxu0 0.0
    %253 = vmatpush1.xpose.msra.mxu0 0.0
    %254 = vmatprep.subr.mxu0 0.0
    %255 = vmatpush1.xpose.msra.mxu0 0.0
    %256 = vmatprep.subr.mxu0 0.0
    %257 = vmatpush1.xpose.msra.mxu0 0.0
    %258 = vmatprep.subr.mxu0 0.0
    %259 = vmatpush1.xpose.msra.mxu0 0.0
    %260 = vmatprep.subr.mxu0 0.0
    %261 = vmatpush1.xpose.msra.mxu0 0.0
    %262 = vmatprep.subr.mxu0 0.0
    %263 = vmatpush1.xpose.msra.mxu0 0.0
    %264 = vmatprep.subr.mxu0 0.0
    %265 = vmatpush1.xpose.msra.mxu0 0.0
    %266 = vmatprep.subr.mxu0 0.0
    %267 = vmatpush1.xpose.msra.mxu0 0.0
    %268 = vmatprep.subr.mxu0 0.0
    %269 = vmatpush1.xpose.msra.mxu0 0.0
    %270 = vmatprep.subr.mxu0 0.0
    %271 = vmatpush1.xpose.msra.mxu0 0.0
    %272 = vmatprep.subr.mxu0 0.0
    %273 = vmatpush1.xpose.msra.mxu0 0.0
    %274 = vmatprep.subr.mxu0 0.0
    %275 = vmatpush1.xpose.msra.mxu0 0.0
    %276 = vmatprep.subr.mxu0 0.0
    %277 = vmatpush1.xpose.msra.mxu0 0.0
    %278 = vmatprep.subr.mxu0 0.0
    %279 = vmatpush1.xpose.msra.mxu0 0.0
    %280 = vmatprep.subr.mxu0 0.0
    %281 = vmatpush1.xpose.msra.mxu0 0.0
    %282 = vmatprep.subr.mxu0 0.0
    %283 = vmatpush1.xpose.msra.mxu0 0.0
    %284 = vmatprep.subr.mxu0 0.0
    %285 = vmatpush1.xpose.msra.mxu0 0.0
    %286 = vmatprep.subr.mxu0 0.0
    %287 = vmatpush1.xpose.msra.mxu0 0.0
    %288 = vmatprep.subr.mxu0 0.0
    %289 = vmatpush1.xpose.msra.mxu0 0.0
    %290 = vmatprep.subr.mxu0 0.0
    %291 = vmatpush1.xpose.msra.mxu0 0.0
    %292 = vmatprep.subr.mxu0 0.0
    %293 = vmatpush1.xpose.msra.mxu0 0.0
    %294 = vmatprep.subr.mxu0 0.0
    %295 = vmatpush1.xpose.msra.mxu0 0.0
    %296 = vmatprep.subr.mxu0 0.0
    %297 = vmatpush1.xpose.msra.mxu0 0.0
    %298 = vmatprep.subr.mxu0 0.0
    %299 = vmatpush1.xpose.msra.mxu0 0.0
    %300 = vmatprep.subr.mxu0 0.0
    %301 = vmatpush1.xpose.msra.mxu0 0.0
    %302 = vmatprep.subr.mxu0 0.0
    %303 = vmatpush1.xpose.msra.mxu0 0.0
    %304 = vmatprep.subr.mxu0 0.0
    %305 = vmatpush1.xpose.msra.mxu0 0.0
    %306 = vmatprep.subr.mxu0 0.0
    %307 = vmatpush1.xpose.msra.mxu0 0.0
    %308 = vmatprep.mubr.f32.mxu0 0.0
    %309 = vmatmul.mubr.f32.gmra.mrb[0].mxu0 %v243
    %v310 = vpop.f32.mrb[0].mxu0
    %v311 = vadd.f32 0.0, %v310
    %v312 = vpop.f32.mrb[0].mxu0
    %313 = vdwg.mxu0
    %s314 = sld [smem:[#allocation2]]
    %v315 = vstv %s314
    %v316 = vadd.f32 %v311, %v315
    %vm317 = vcmask 57344
    %318 = vst.msk [vmem:[#allocation9] sm:$0x1] %vm317, %v316
    // Predicated region
    $region42: #{tpu_custom_call.1} parent=1 // pred_check
      _
    $region43: #{tpu_custom_call.1} parent=1 // pred_check_branch
      %320 = sbr.rel (0) target = $region45
    $region44: #{tpu_custom_call.1} parent=1 // pred_region
      %s322 = ssub.s32 16, 16
      %323 = vsyncadd [#allocation5], %s322
      %s325 = sshll.u32 [#allocation9], 4
      %s326 = int_to_ptr.vmem [resolvable:$true] %s325
      %328 = dma.vmem_to_hbm [thread:$0]  %s326, 16, %s7, [#allocation5]
    $region45: #{tpu_custom_call.1} parent=1 // pred_fallthru
      _
    // Predicated region
    $region46: #{tpu_custom_call.1} parent=1 // pred_check
      _
    $region47: #{tpu_custom_call.1} parent=1 // pred_check_branch
      %330 = sbr.rel (0) target = $region49
    $region48: #{tpu_custom_call.1} parent=1 // pred_region
      %331 = dma.done [#allocation5], 16
    $region49: #{tpu_custom_call.1} parent=1 // pred_fallthru
      _
    %332 = vsyncpa [#allocation4], 1
    %333 = vsyncpa [#allocation7], 1
    %334 = vsyncpa [#allocation5], 1

</llo_original>
